<compile_context>
chip_gen: v7x
topology: tpu7x:2x2x1
jax: 0.10.0
libtpu: 0.0.40
codegen_flags: <defaults>
</compile_context>

<pallas_src>
import jax
import jax.numpy as jnp
from jax.experimental import pallas as pl
from jax.experimental.pallas import tpu as pltpu

_LANE_WIDTH = 512       # lane-dense slab width (multiple of 128)
_MAX_BLOCK_ROWS = 512   # 1 MiB f32 per plane per tile (2 MiB stacked)
_MIN_SPLIT_ROWS = 64    # below this, a single grid step is cheapest


def _round_up(n: int, m: int) -> int:
    return ((n + m - 1) // m) * m


def _cdiv(a: int, b: int) -> int:
    return -(-a // b)


def _complex_sigmoid_kernel(x_ref, o_ref):
    # x_ref / o_ref: (2, block_rows, W) f32; plane 0 = real, plane 1 = imag.
    re = x_ref[0]
    im = x_ref[1]
    e = jnp.exp(-re)                 # EUP
    ecb = e * jnp.cos(im)            # EUP + VPU
    esb = e * jnp.sin(im)            # EUP + VPU
    dr = 1.0 + ecb
    d = dr * dr + esb * esb
    # Approx reciprocal (single EUP push) + one Newton step on the VPU to
    # recover full f32 accuracy (rel error ~eps^2), keeping the 1e-5 atol.
    r = pl.reciprocal(d, approx=True)
    inv = r * (2.0 - d * r)
    o_ref[0] = dr * inv
    o_ref[1] = esb * inv


def complex_sigmoid(x: jax.Array) -> jax.Array:
    """1 / (1 + exp(-x)) for a complex array, computed with a Pallas TPU kernel."""
    orig_shape = x.shape
    n = int(x.size)
    if n == 0:
        return jnp.zeros(orig_shape, dtype=jnp.complex64)

    # One fused pack pass: real/imag extraction, pad, stack, reshape all fuse
    # into a single XLA fusion (read x once, write the planar slab once).
    re = jnp.real(x).astype(jnp.float32).reshape(-1)
    im = jnp.imag(x).astype(jnp.float32).reshape(-1)

    rows_raw = _cdiv(n, _LANE_WIDTH)
    if rows_raw <= _MIN_SPLIT_ROWS:
        # Tiny input: one block; per-step overhead dominates any split.
        block_rows = max(8, _round_up(rows_raw, 8))
    else:
        # Aim for >=4 grid steps so both v7x TensorCores participate and the
        # double-buffer pipeline stays full on all generations, while keeping
        # the tile at <=512 rows (2 MiB stacked, ~8 MiB live double-buffered).
        block_rows = min(_MAX_BLOCK_ROWS, _round_up(_cdiv(rows_raw, 4), 8))

    rows = _round_up(rows_raw, block_rows)   # grid divides rows exactly
    padded = rows * _LANE_WIDTH
    pad = padded - n
    if pad:
        re = jnp.pad(re, (0, pad))
        im = jnp.pad(im, (0, pad))

    # Single stacked planar slab: one input DMA stream, one output DMA stream.
    xin = jnp.stack([re, im]).reshape(2, rows, _LANE_WIDTH)

    grid = (rows // block_rows,)

    n_cplx = rows * _LANE_WIDTH              # complex elements incl. padding
    cost = pl.CostEstimate(
        flops=12 * n_cplx,                   # VPU ops per complex element
        transcendentals=4 * n_cplx,          # exp, cos, sin, approx recip
        bytes_accessed=16 * n_cplx,          # 8 B in + 8 B out per complex
    )

    out = pl.pallas_call(
        _complex_sigmoid_kernel,
        out_shape=jax.ShapeDtypeStruct((2, rows, _LANE_WIDTH), jnp.float32),
        grid=grid,
        in_specs=[
            pl.BlockSpec((2, block_rows, _LANE_WIDTH), lambda i: (0, i, 0)),
        ],
        out_specs=pl.BlockSpec((2, block_rows, _LANE_WIDTH), lambda i: (0, i, 0)),
        compiler_params=pltpu.CompilerParams(
            dimension_semantics=("parallel",),
        ),
        cost_estimate=cost,
    )(xin)

    # One fused unpack pass: slice planes, trim pad, reassemble complex.
    out_re = out[0].reshape(-1)[:n].reshape(orig_shape)
    out_im = out[1].reshape(-1)[:n].reshape(orig_shape)
    return jax.lax.complex(out_re, out_im)


def _reference(x):
    # Exactly the PyTorch module's formula, evaluated with complex arithmetic.
    return 1.0 / (1.0 + jnp.exp(-x))


if __name__ == "__main__":
    key = jax.random.PRNGKey(0)
    k_re, k_im = jax.random.split(key)

    # Small NCHW complex activation, consistent with a complex-valued conv net.
    shape = (2, 4, 16, 16)
    x_re = jax.random.normal(k_re, shape, dtype=jnp.float32)
    x_im = jax.random.normal(k_im, shape, dtype=jnp.float32)
    x = jax.lax.complex(x_re, x_im)  # complex64

    out = complex_sigmoid(x)
    out = jax.block_until_ready(out)

    ref = _reference(x)
    assert out.shape == shape and out.dtype == jnp.complex64
    assert jnp.allclose(out, ref, atol=1e-5, rtol=1e-4)

    print("KERNEL_OK")
</pallas_src>

<mosaic_0001>
module attributes {stable_mosaic.version = 11 : i64} {
  func.func @_complex_sigmoid_kernel(%arg0: i32, %arg1: memref<2x8x512xf32, #tpu.memory_space<vmem>>, %arg2: memref<2x8x512xf32, #tpu.memory_space<vmem>>) attributes {dimension_semantics = [#tpu.dimension_semantics<parallel>], iteration_bounds = array<i64: 1>, scalar_prefetch = 0 : i64, scratch_operands = 0 : i64, tpu.core_type = #tpu.core_type<tc>, window_params = [{transform_indices = @transform_0, window_bounds = array<i64: 2, 8, 512>}, {transform_indices = @transform_1, window_bounds = array<i64: 2, 8, 512>}]} {
    %c0 = arith.constant 0 : index
    %c0_0 = arith.constant 0 : index
    %c0_1 = arith.constant 0 : index
    %0 = vector.load %arg1[%c0, %c0_0, %c0_1] : memref<2x8x512xf32, #tpu.memory_space<vmem>>, vector<1x8x512xf32>
    %1 = vector.shape_cast %0 : vector<1x8x512xf32> to vector<8x512xf32>
    %c1 = arith.constant 1 : index
    %c0_2 = arith.constant 0 : index
    %c0_3 = arith.constant 0 : index
    %2 = vector.load %arg1[%c1, %c0_2, %c0_3] : memref<2x8x512xf32, #tpu.memory_space<vmem>>, vector<1x8x512xf32>
    %3 = vector.shape_cast %2 : vector<1x8x512xf32> to vector<8x512xf32>
    %cst = arith.constant 0.000000e+00 : f32
    %4 = vector.broadcast %cst : f32 to vector<8x512xf32>
    %5 = arith.subf %4, %1 : vector<8x512xf32>
    %6 = math.exp %5 : vector<8x512xf32>
    %7 = math.cos %3 : vector<8x512xf32>
    %8 = arith.mulf %6, %7 : vector<8x512xf32>
    %9 = math.sin %3 : vector<8x512xf32>
    %10 = arith.mulf %6, %9 : vector<8x512xf32>
    %cst_4 = arith.constant 1.000000e+00 : f32
    %11 = vector.broadcast %cst_4 : f32 to vector<8x512xf32>
    %12 = arith.addf %11, %8 : vector<8x512xf32>
    %13 = arith.mulf %12, %12 : vector<8x512xf32>
    %14 = arith.mulf %10, %10 : vector<8x512xf32>
    %15 = arith.addf %13, %14 : vector<8x512xf32>
    %16 = tpu.reciprocal %15 {approx = true} : vector<8x512xf32> -> vector<8x512xf32>
    %17 = arith.mulf %15, %16 : vector<8x512xf32>
    %cst_5 = arith.constant 2.000000e+00 : f32
    %18 = vector.broadcast %cst_5 : f32 to vector<8x512xf32>
    %19 = arith.subf %18, %17 : vector<8x512xf32>
    %20 = arith.mulf %16, %19 : vector<8x512xf32>
    %21 = arith.mulf %12, %20 : vector<8x512xf32>
    %c0_6 = arith.constant 0 : index
    %c0_7 = arith.constant 0 : index
    %c0_8 = arith.constant 0 : index
    %22 = vector.load %arg2[%c0_6, %c0_7, %c0_8] : memref<2x8x512xf32, #tpu.memory_space<vmem>>, vector<1x8x512xf32>
    %23 = vector.shape_cast %22 : vector<1x8x512xf32> to vector<8x512xf32>
    %24 = vector.shape_cast %21 : vector<8x512xf32> to vector<1x8x512xf32>
    tpu.vector_store %arg2[%c0_6, %c0_7, %c0_8], %24 {strides = array<i32>} : memref<2x8x512xf32, #tpu.memory_space<vmem>>, vector<1x8x512xf32>,
    %25 = arith.mulf %10, %20 : vector<8x512xf32>
    %c1_9 = arith.constant 1 : index
    %c0_10 = arith.constant 0 : index
    %c0_11 = arith.constant 0 : index
    %26 = vector.load %arg2[%c1_9, %c0_10, %c0_11] : memref<2x8x512xf32, #tpu.memory_space<vmem>>, vector<1x8x512xf32>
    %27 = vector.shape_cast %26 : vector<1x8x512xf32> to vector<8x512xf32>
    %28 = vector.shape_cast %25 : vector<8x512xf32> to vector<1x8x512xf32>
    tpu.vector_store %arg2[%c1_9, %c0_10, %c0_11], %28 {strides = array<i32>} : memref<2x8x512xf32, #tpu.memory_space<vmem>>, vector<1x8x512xf32>,
    return
  }
  func.func @transform_0(%arg0: i32) -> (i32, i32, i32) {
    %c0_i32 = arith.constant 0 : i32
    %c0_i32_0 = arith.constant 0 : i32
    %c0_i32_1 = arith.constant 0 : i32
    return %c0_i32, %arg0, %c0_i32_0 : i32, i32, i32
  }
  func.func @transform_1(%arg0: i32) -> (i32, i32, i32) {
    %c0_i32 = arith.constant 0 : i32
    %c0_i32_0 = arith.constant 0 : i32
    %c0_i32_1 = arith.constant 0 : i32
    return %c0_i32, %arg0, %c0_i32_0 : i32, i32, i32
  }
}

</mosaic_0001>

<llo_original>
// kernel: tpu_custom_call.1
$region0: #{tpu_custom_call.1}
  #allocation0 [shape = 'u32[]', space=smem, size = 0x4, offset = 0x4, fixed_abs, tag = 'smem constant byte address 0x4 - core index']
  #allocation1 [shape = 'u32[144,128]{1,0:T(1,128)}', space=vmem, size = 0x12000, scoped, tag = 'internal scratch']
  %s0 = inlined_call_operand.hbm [shape: f32[2,8,512], index: 0, kind: input, shape index: {}]
  %s1 = inlined_call_operand.hbm [shape: f32[2,8,512], index: 1, kind: output, shape index: {}]
  %s2 = sld [smem:[#allocation0]]
  $region18: #{tpu_custom_call.1} parent=0
    _
  %s4 = ssub.s32 1, %s2
  %s5 = scalar_select 0, %s4, %s2
  $region1: #{tpu_custom_call.1} parent=0
    #allocation2 [shape = 'u8[32768]{0}', space=vmem, size = 0x8000, scoped, tag = 'input window, operand 0, single buffered']
    #allocation3 [shape = 's32[1]{0}', space=sflag, size = 0x4, scoped, tag = 'scoped memory for tpu_custom_call.1']
    #allocation4 [shape = 's32[1]{0}', space=sflag, size = 0x4, scoped, tag = 'scoped memory for tpu_custom_call.1']
    #allocation5 [shape = 'u8[32768]{0}', space=vmem, size = 0x8000, scoped, tag = 'output window, operand 0, single buffered']
    %6 = vsyncpa [#allocation3], 0
    %7 = vsyncpa [#allocation4], 0
    // Predicated region
    $region2: #{tpu_custom_call.1} parent=1 // pred_check
      _
    $region3: #{tpu_custom_call.1} parent=1 // pred_check_branch
      %9 = sbr.rel (0) target = $region5
    $region4: #{tpu_custom_call.1} parent=1 // pred_region
      %s11 = ssub.s32 1024, 1024
      %12 = vsyncadd [#allocation3], %s11
      %s13 = sshll.u32 [#allocation2], 4
      %s14 = int_to_ptr.vmem [resolvable:$true] %s13
      %19 = dma.hbm_to_vmem [thread:$0]  %s0, 1024, %s14, [#allocation3], 512, 512, 32
    $region5: #{tpu_custom_call.1} parent=1 // pred_fallthru
      _
    // Predicated region
    $region6: #{tpu_custom_call.1} parent=1 // pred_check
      _
    $region7: #{tpu_custom_call.1} parent=1 // pred_check_branch
      %21 = sbr.rel (0) target = $region9
    $region8: #{tpu_custom_call.1} parent=1 // pred_region
      %22 = dma.done [#allocation3], 1024
    $region9: #{tpu_custom_call.1} parent=1 // pred_fallthru
      _
    %v23 = vld [vmem:[#allocation2] sm:$0xff]
    %v24 = vld [vmem:[#allocation2 + $0x8] sm:$0xff]
    %v25 = vld [vmem:[#allocation2 + $0x10] sm:$0xff]
    %v26 = vld [vmem:[#allocation2 + $0x18] sm:$0xff]
    %s27 = scalar_lea.vmem [#allocation2], 32
    %v28 = vld [vmem:[%s27] sm:$0xff]
    %v29 = vld [vmem:[%s27 + $0x8] sm:$0xff]
    %v30 = vld [vmem:[%s27 + $0x10] sm:$0xff]
    %v31 = vld [vmem:[%s27 + $0x18] sm:$0xff]
    %v32 = vsub.f32 0.0, %v23
    %v33 = vsub.f32 0.0, %v24
    %v34 = vsub.f32 0.0, %v25
    %v35 = vsub.f32 0.0, %v26
    %v36 = vmul.f32 %v32, 1.442695
    %v37 = vpow.pop %v36
    %v38 = vmul.f32 %v33, 1.442695
    %v39 = vpow.pop %v38
    %v40 = vmul.f32 %v34, 1.442695
    %v41 = vpow.pop %v40
    %v42 = vmul.f32 %v35, 1.442695
    %v43 = vpow.pop %v42
    %v44 = vand.u32 2147483647, %v28
    %vm45 = vcmp.le.f32.partialorder %v44, 0.7853982
    %vm46 = vcmp.lt.s32.totalorder %v28, 0
    %v47 = vand.u32 %v28, 2139095040
    %v48 = vshrl.u32 %v47, 23
    %v49 = vsub.s32 %v48, 127
    %v50 = vand.u32 2147483647, %v28
    %v51 = vand.u32 %v50, 8388607
    %v52 = vor.u32 %v51, 8388608
    %v53 = vsub.s32 0, %v52
    %v54 = vadd.s32 %v49, 1
    %vm55 = vcmp.gt.s32.totalorder %v54, 0
    %v56 = vsel %vm55, %v54, 0
    %v57 = vshrl.u32 %v56, 5
    %v58 = vand.u32 %v56, 31
    %v59 = vsub.s32 32, %v58
    %v60 = vshrl.u32 683565275, %v59
    %v61 = vshll.u32 683565275, %v58
    %v62 = vshrl.u32 2475754826, %v59
    %v63 = vor.u32 %v61, %v62
    %v64 = vshll.u32 2475754826, %v58
    %v65 = vshrl.u32 2131351028, %v59
    %v66 = vor.u32 %v64, %v65
    %v67 = vshll.u32 2131351028, %v58
    %v68 = vshrl.u32 2102212464, %v59
    %v69 = vor.u32 %v67, %v68
    %v70 = vshll.u32 2102212464, %v58
    %v71 = vshrl.u32 920167782, %v59
    %v72 = vor.u32 %v70, %v71
    %v73 = vshll.u32 920167782, %v58
    %v74 = vshrl.u32 1326507024, %v59
    %v75 = vor.u32 %v73, %v74
    %vm76 = vcmp.lt.s32.totalorder %v57, 1
    %vm77 = vcmp.lt.s32.totalorder %v57, 2
    %vm78 = vcmp.lt.s32.totalorder %v57, 3
    %vm79 = vcmp.lt.s32.totalorder %v57, 4
    %v80 = vsel %vm76, %v60, %v63
    %v81 = vsel %vm79, %v69, 2102212464
    %v82 = vsel %vm78, %v66, %v81
    %v83 = vsel %vm77, %v80, %v82
    %v84 = vsel %vm76, %v63, %v66
    %v85 = vsel %vm79, %v72, 920167782
    %v86 = vsel %vm78, %v69, %v85
    %v87 = vsel %vm77, %v84, %v86
    %v88 = vsel %vm76, %v66, %v69
    %v89 = vsel %vm79, %v75, 1326507024
    %v90 = vsel %vm78, %v72, %v89
    %v91 = vsel %vm77, %v88, %v90
    %v92 = vshll.u32 %v52, 8
    %v93 = vmul.u32.u64.compose %v92, %v91
    %v94 = vextract.low.u32 %v93
    %v95 = vextract.high.u32 %v93
    %v96 = vmul.u32.u64.compose %v92, %v87
    %v97 = vextract.low.u32 %v96
    %v98 = vextract.high.u32 %v96
    %v99 = vmul.u32 %v92, %v83
    %v100 = vadd.s32 %v95, %v97
    %vm101 = vc.u32 %v95, %v97
    %v102 = vadd.s32 %v98, 1
    %v103 = vsel %vm101, %v102, %v98
    %v104 = vadd.s32 %v99, %v103
    %v105 = vadd.s32 %v104, 536870912
    %v106 = vshrl.u32 %v105, 30
    %v107 = vshll.u32 %v106, 30
    %v108 = vsub.s32 %v104, %v107
    %vm109 = vcmp.lt.s32.totalorder %v108, 0
    %v110 = vsub.s32 0, %v108
    %v111 = vsel %vm109, %v110, %v108
    %v112 = vclz %v111
    %v113 = vsub.s32 %v112, 2
    %vm114 = vcmp.gt.s32.totalorder 0, %v113
    %v115 = vsel %vm114, 0, %v113
    %v116 = vsub.s32 32, %v115
    %v117 = vshll.u32 %v108, %v115
    %v118 = vshrl.u32 %v100, %v116
    %v119 = vor.u32 %v117, %v118
    %v120 = vsub.s32 4294967266, %v115
    %v121 = vadd.s32 %v120, 127
    %v122 = vshll.u32 %v121, 23
    %v123 = vor.u32 4788187, %v122
    %v124 = vand.u32 2147483647, %v123
    %v126 = vcvt.s32.f32 %v119
    %v127 = vmul.f32 %v126, %v124
    %v128 = vxor.u32 %v127, 2147483648
    %v129 = vsel %vm46, %v128, %v127
    %v130 = vsub.s32 4, %v106
    %v131 = vsel %vm46, %v130, %v106
    %v132 = vsel %vm45, %v28, %v129
    %v133 = vsel %vm45, 0, %v131
    %v134 = vcosq.f32.pop %v132
    %v135 = vsinq.f32.pop %v132
    %vm136 = vweird.f32 %v28
    %v137 = vand.u32 %v133, 3
    %vm138 = vcmp.lt.s32.totalorder %v137, 2
    %vm139 = vcmp.eq.s32.totalorder %v137, 0
    %v140 = vxor.u32 %v135, 2147483648
    %v141 = vsel %vm139, %v134, %v140
    %vm142 = vcmp.eq.s32.totalorder %v137, 2
    %v143 = vxor.u32 %v134, 2147483648
    %v144 = vsel %vm142, %v143, %v135
    %v145 = vsel %vm138, %v141, %v144
    %v146 = vsel %vm136, nan, %v145
    %v147 = vand.u32 2147483647, %v29
    %vm148 = vcmp.le.f32.partialorder %v147, 0.7853982
    %vm149 = vcmp.lt.s32.totalorder %v29, 0
    %v150 = vand.u32 %v29, 2139095040
    %v151 = vshrl.u32 %v150, 23
    %v152 = vsub.s32 %v151, 127
    %v153 = vand.u32 2147483647, %v29
    %v154 = vand.u32 %v153, 8388607
    %v155 = vor.u32 %v154, 8388608
    %v156 = vsub.s32 0, %v155
    %v157 = vadd.s32 %v152, 1
    %vm158 = vcmp.gt.s32.totalorder %v157, 0
    %v159 = vsel %vm158, %v157, 0
    %v160 = vshrl.u32 %v159, 5
    %v161 = vand.u32 %v159, 31
    %v162 = vsub.s32 32, %v161
    %v163 = vshrl.u32 683565275, %v162
    %v164 = vshll.u32 683565275, %v161
    %v165 = vshrl.u32 2475754826, %v162
    %v166 = vor.u32 %v164, %v165
    %v167 = vshll.u32 2475754826, %v161
    %v168 = vshrl.u32 2131351028, %v162
    %v169 = vor.u32 %v167, %v168
    %v170 = vshll.u32 2131351028, %v161
    %v171 = vshrl.u32 2102212464, %v162
    %v172 = vor.u32 %v170, %v171
    %v173 = vshll.u32 2102212464, %v161
    %v174 = vshrl.u32 920167782, %v162
    %v175 = vor.u32 %v173, %v174
    %v176 = vshll.u32 920167782, %v161
    %v177 = vshrl.u32 1326507024, %v162
    %v178 = vor.u32 %v176, %v177
    %vm179 = vcmp.lt.s32.totalorder %v160, 1
    %vm180 = vcmp.lt.s32.totalorder %v160, 2
    %vm181 = vcmp.lt.s32.totalorder %v160, 3
    %vm182 = vcmp.lt.s32.totalorder %v160, 4
    %v183 = vsel %vm179, %v163, %v166
    %v184 = vsel %vm182, %v172, 2102212464
    %v185 = vsel %vm181, %v169, %v184
    %v186 = vsel %vm180, %v183, %v185
    %v187 = vsel %vm179, %v166, %v169
    %v188 = vsel %vm182, %v175, 920167782
    %v189 = vsel %vm181, %v172, %v188
    %v190 = vsel %vm180, %v187, %v189
    %v191 = vsel %vm179, %v169, %v172
    %v192 = vsel %vm182, %v178, 1326507024
    %v193 = vsel %vm181, %v175, %v192
    %v194 = vsel %vm180, %v191, %v193
    %v195 = vshll.u32 %v155, 8
    %v196 = vmul.u32.u64.compose %v195, %v194
    %v197 = vextract.low.u32 %v196
    %v198 = vextract.high.u32 %v196
    %v199 = vmul.u32.u64.compose %v195, %v190
    %v200 = vextract.low.u32 %v199
    %v201 = vextract.high.u32 %v199
    %v202 = vmul.u32 %v195, %v186
    %v203 = vadd.s32 %v198, %v200
    %vm204 = vc.u32 %v198, %v200
    %v205 = vadd.s32 %v201, 1
    %v206 = vsel %vm204, %v205, %v201
    %v207 = vadd.s32 %v202, %v206
    %v208 = vadd.s32 %v207, 536870912
    %v209 = vshrl.u32 %v208, 30
    %v210 = vshll.u32 %v209, 30
    %v211 = vsub.s32 %v207, %v210
    %vm212 = vcmp.lt.s32.totalorder %v211, 0
    %v213 = vsub.s32 0, %v211
    %v214 = vsel %vm212, %v213, %v211
    %v215 = vclz %v214
    %v216 = vsub.s32 %v215, 2
    %vm217 = vcmp.gt.s32.totalorder 0, %v216
    %v218 = vsel %vm217, 0, %v216
    %v219 = vsub.s32 32, %v218
    %v220 = vshll.u32 %v211, %v218
    %v221 = vshrl.u32 %v203, %v219
    %v222 = vor.u32 %v220, %v221
    %v223 = vsub.s32 4294967266, %v218
    %v224 = vadd.s32 %v223, 127
    %v225 = vshll.u32 %v224, 23
    %v226 = vor.u32 4788187, %v225
    %v227 = vand.u32 2147483647, %v226
    %v229 = vcvt.s32.f32 %v222
    %v230 = vmul.f32 %v229, %v227
    %v231 = vxor.u32 %v230, 2147483648
    %v232 = vsel %vm149, %v231, %v230
    %v233 = vsub.s32 4, %v209
    %v234 = vsel %vm149, %v233, %v209
    %v235 = vsel %vm148, %v29, %v232
    %v236 = vsel %vm148, 0, %v234
    %v237 = vcosq.f32.pop %v235
    %v238 = vsinq.f32.pop %v235
    %vm239 = vweird.f32 %v29
    %v240 = vand.u32 %v236, 3
    %vm241 = vcmp.lt.s32.totalorder %v240, 2
    %vm242 = vcmp.eq.s32.totalorder %v240, 0
    %v243 = vxor.u32 %v238, 2147483648
    %v244 = vsel %vm242, %v237, %v243
    %vm245 = vcmp.eq.s32.totalorder %v240, 2
    %v246 = vxor.u32 %v237, 2147483648
    %v247 = vsel %vm245, %v246, %v238
    %v248 = vsel %vm241, %v244, %v247
    %v249 = vsel %vm239, nan, %v248
    %v250 = vand.u32 2147483647, %v30
    %vm251 = vcmp.le.f32.partialorder %v250, 0.7853982
    %vm252 = vcmp.lt.s32.totalorder %v30, 0
    %v253 = vand.u32 %v30, 2139095040
    %v254 = vshrl.u32 %v253, 23
    %v255 = vsub.s32 %v254, 127
    %v256 = vand.u32 2147483647, %v30
    %v257 = vand.u32 %v256, 8388607
    %v258 = vor.u32 %v257, 8388608
    %v259 = vsub.s32 0, %v258
    %v260 = vadd.s32 %v255, 1
    %vm261 = vcmp.gt.s32.totalorder %v260, 0
    %v262 = vsel %vm261, %v260, 0
    %v263 = vshrl.u32 %v262, 5
    %v264 = vand.u32 %v262, 31
    %v265 = vsub.s32 32, %v264
    %v266 = vshrl.u32 683565275, %v265
    %v267 = vshll.u32 683565275, %v264
    %v268 = vshrl.u32 2475754826, %v265
    %v269 = vor.u32 %v267, %v268
    %v270 = vshll.u32 2475754826, %v264
    %v271 = vshrl.u32 2131351028, %v265
    %v272 = vor.u32 %v270, %v271
    %v273 = vshll.u32 2131351028, %v264
    %v274 = vshrl.u32 2102212464, %v265
    %v275 = vor.u32 %v273, %v274
    %v276 = vshll.u32 2102212464, %v264
    %v277 = vshrl.u32 920167782, %v265
    %v278 = vor.u32 %v276, %v277
    %v279 = vshll.u32 920167782, %v264
    %v280 = vshrl.u32 1326507024, %v265
    %v281 = vor.u32 %v279, %v280
    %vm282 = vcmp.lt.s32.totalorder %v263, 1
    %vm283 = vcmp.lt.s32.totalorder %v263, 2
    %vm284 = vcmp.lt.s32.totalorder %v263, 3
    %vm285 = vcmp.lt.s32.totalorder %v263, 4
    %v286 = vsel %vm282, %v266, %v269
    %v287 = vsel %vm285, %v275, 2102212464
    %v288 = vsel %vm284, %v272, %v287
    %v289 = vsel %vm283, %v286, %v288
    %v290 = vsel %vm282, %v269, %v272
    %v291 = vsel %vm285, %v278, 920167782
    %v292 = vsel %vm284, %v275, %v291
    %v293 = vsel %vm283, %v290, %v292
    %v294 = vsel %vm282, %v272, %v275
    %v295 = vsel %vm285, %v281, 1326507024
    %v296 = vsel %vm284, %v278, %v295
    %v297 = vsel %vm283, %v294, %v296
    %v298 = vshll.u32 %v258, 8
    %v299 = vmul.u32.u64.compose %v298, %v297
    %v300 = vextract.low.u32 %v299
    %v301 = vextract.high.u32 %v299
    %v302 = vmul.u32.u64.compose %v298, %v293
    %v303 = vextract.low.u32 %v302
    %v304 = vextract.high.u32 %v302
    %v305 = vmul.u32 %v298, %v289
    %v306 = vadd.s32 %v301, %v303
    %vm307 = vc.u32 %v301, %v303
    %v308 = vadd.s32 %v304, 1
    %v309 = vsel %vm307, %v308, %v304
    %v310 = vadd.s32 %v305, %v309
    %v311 = vadd.s32 %v310, 536870912
    %v312 = vshrl.u32 %v311, 30
    %v313 = vshll.u32 %v312, 30
    %v314 = vsub.s32 %v310, %v313
    %vm315 = vcmp.lt.s32.totalorder %v314, 0
    %v316 = vsub.s32 0, %v314
    %v317 = vsel %vm315, %v316, %v314
    %v318 = vclz %v317
    %v319 = vsub.s32 %v318, 2
    %vm320 = vcmp.gt.s32.totalorder 0, %v319
    %v321 = vsel %vm320, 0, %v319
    %v322 = vsub.s32 32, %v321
    %v323 = vshll.u32 %v314, %v321
    %v324 = vshrl.u32 %v306, %v322
    %v325 = vor.u32 %v323, %v324
    %v326 = vsub.s32 4294967266, %v321
    %v327 = vadd.s32 %v326, 127
    %v328 = vshll.u32 %v327, 23
    %v329 = vor.u32 4788187, %v328
    %v330 = vand.u32 2147483647, %v329
    %v332 = vcvt.s32.f32 %v325
    %v333 = vmul.f32 %v332, %v330
    %v334 = vxor.u32 %v333, 2147483648
    %v335 = vsel %vm252, %v334, %v333
    %v336 = vsub.s32 4, %v312
    %v337 = vsel %vm252, %v336, %v312
    %v338 = vsel %vm251, %v30, %v335
    %v339 = vsel %vm251, 0, %v337
    %v340 = vcosq.f32.pop %v338
    %v341 = vsinq.f32.pop %v338
    %vm342 = vweird.f32 %v30
    %v343 = vand.u32 %v339, 3
    %vm344 = vcmp.lt.s32.totalorder %v343, 2
    %vm345 = vcmp.eq.s32.totalorder %v343, 0
    %v346 = vxor.u32 %v341, 2147483648
    %v347 = vsel %vm345, %v340, %v346
    %vm348 = vcmp.eq.s32.totalorder %v343, 2
    %v349 = vxor.u32 %v340, 2147483648
    %v350 = vsel %vm348, %v349, %v341
    %v351 = vsel %vm344, %v347, %v350
    %v352 = vsel %vm342, nan, %v351
    %v353 = vand.u32 2147483647, %v31
    %vm354 = vcmp.le.f32.partialorder %v353, 0.7853982
    %vm355 = vcmp.lt.s32.totalorder %v31, 0
    %v356 = vand.u32 %v31, 2139095040
    %v357 = vshrl.u32 %v356, 23
    %v358 = vsub.s32 %v357, 127
    %v359 = vand.u32 2147483647, %v31
    %v360 = vand.u32 %v359, 8388607
    %v361 = vor.u32 %v360, 8388608
    %v362 = vsub.s32 0, %v361
    %v363 = vadd.s32 %v358, 1
    %vm364 = vcmp.gt.s32.totalorder %v363, 0
    %v365 = vsel %vm364, %v363, 0
    %v366 = vshrl.u32 %v365, 5
    %v367 = vand.u32 %v365, 31
    %v368 = vsub.s32 32, %v367
    %v369 = vshrl.u32 683565275, %v368
    %v370 = vshll.u32 683565275, %v367
    %v371 = vshrl.u32 2475754826, %v368
    %v372 = vor.u32 %v370, %v371
    %v373 = vshll.u32 2475754826, %v367
    %v374 = vshrl.u32 2131351028, %v368
    %v375 = vor.u32 %v373, %v374
    %v376 = vshll.u32 2131351028, %v367
    %v377 = vshrl.u32 2102212464, %v368
    %v378 = vor.u32 %v376, %v377
    %v379 = vshll.u32 2102212464, %v367
    %v380 = vshrl.u32 920167782, %v368
    %v381 = vor.u32 %v379, %v380
    %v382 = vshll.u32 920167782, %v367
    %v383 = vshrl.u32 1326507024, %v368
    %v384 = vor.u32 %v382, %v383
    %vm385 = vcmp.lt.s32.totalorder %v366, 1
    %vm386 = vcmp.lt.s32.totalorder %v366, 2
    %vm387 = vcmp.lt.s32.totalorder %v366, 3
    %vm388 = vcmp.lt.s32.totalorder %v366, 4
    %v389 = vsel %vm385, %v369, %v372
    %v390 = vsel %vm388, %v378, 2102212464
    %v391 = vsel %vm387, %v375, %v390
    %v392 = vsel %vm386, %v389, %v391
    %v393 = vsel %vm385, %v372, %v375
    %v394 = vsel %vm388, %v381, 920167782
    %v395 = vsel %vm387, %v378, %v394
    %v396 = vsel %vm386, %v393, %v395
    %v397 = vsel %vm385, %v375, %v378
    %v398 = vsel %vm388, %v384, 1326507024
    %v399 = vsel %vm387, %v381, %v398
    %v400 = vsel %vm386, %v397, %v399
    %v401 = vshll.u32 %v361, 8
    %v402 = vmul.u32.u64.compose %v401, %v400
    %v403 = vextract.low.u32 %v402
    %v404 = vextract.high.u32 %v402
    %v405 = vmul.u32.u64.compose %v401, %v396
    %v406 = vextract.low.u32 %v405
    %v407 = vextract.high.u32 %v405
    %v408 = vmul.u32 %v401, %v392
    %v409 = vadd.s32 %v404, %v406
    %vm410 = vc.u32 %v404, %v406
    %v411 = vadd.s32 %v407, 1
    %v412 = vsel %vm410, %v411, %v407
    %v413 = vadd.s32 %v408, %v412
    %v414 = vadd.s32 %v413, 536870912
    %v415 = vshrl.u32 %v414, 30
    %v416 = vshll.u32 %v415, 30
    %v417 = vsub.s32 %v413, %v416
    %vm418 = vcmp.lt.s32.totalorder %v417, 0
    %v419 = vsub.s32 0, %v417
    %v420 = vsel %vm418, %v419, %v417
    %v421 = vclz %v420
    %v422 = vsub.s32 %v421, 2
    %vm423 = vcmp.gt.s32.totalorder 0, %v422
    %v424 = vsel %vm423, 0, %v422
    %v425 = vsub.s32 32, %v424
    %v426 = vshll.u32 %v417, %v424
    %v427 = vshrl.u32 %v409, %v425
    %v428 = vor.u32 %v426, %v427
    %v429 = vsub.s32 4294967266, %v424
    %v430 = vadd.s32 %v429, 127
    %v431 = vshll.u32 %v430, 23
    %v432 = vor.u32 4788187, %v431
    %v433 = vand.u32 2147483647, %v432
    %v435 = vcvt.s32.f32 %v428
    %v436 = vmul.f32 %v435, %v433
    %v437 = vxor.u32 %v436, 2147483648
    %v438 = vsel %vm355, %v437, %v436
    %v439 = vsub.s32 4, %v415
    %v440 = vsel %vm355, %v439, %v415
    %v441 = vsel %vm354, %v31, %v438
    %v442 = vsel %vm354, 0, %v440
    %v443 = vcosq.f32.pop %v441
    %v444 = vsinq.f32.pop %v441
    %vm445 = vweird.f32 %v31
    %v446 = vand.u32 %v442, 3
    %vm447 = vcmp.lt.s32.totalorder %v446, 2
    %vm448 = vcmp.eq.s32.totalorder %v446, 0
    %v449 = vxor.u32 %v444, 2147483648
    %v450 = vsel %vm448, %v443, %v449
    %vm451 = vcmp.eq.s32.totalorder %v446, 2
    %v452 = vxor.u32 %v443, 2147483648
    %v453 = vsel %vm451, %v452, %v444
    %v454 = vsel %vm447, %v450, %v453
    %v455 = vsel %vm445, nan, %v454
    %v456 = vmul.f32 %v37, %v146
    %v457 = vmul.f32 %v39, %v249
    %v458 = vmul.f32 %v41, %v352
    %v459 = vmul.f32 %v43, %v455
    %v460 = vand.u32 2147483647, %v28
    %vm461 = vcmp.le.f32.partialorder %v460, 0.7853982
    %vm462 = vcmp.lt.s32.totalorder %v28, 0
    %v463 = vand.u32 %v28, 2139095040
    %v464 = vshrl.u32 %v463, 23
    %v465 = vsub.s32 %v464, 127
    %v466 = vand.u32 2147483647, %v28
    %v467 = vand.u32 %v466, 8388607
    %v468 = vor.u32 %v467, 8388608
    %v469 = vsub.s32 0, %v468
    %v470 = vadd.s32 %v465, 1
    %vm471 = vcmp.gt.s32.totalorder %v470, 0
    %v472 = vsel %vm471, %v470, 0
    %v473 = vshrl.u32 %v472, 5
    %v474 = vand.u32 %v472, 31
    %v475 = vsub.s32 32, %v474
    %v476 = vshrl.u32 683565275, %v475
    %v477 = vshll.u32 683565275, %v474
    %v478 = vshrl.u32 2475754826, %v475
    %v479 = vor.u32 %v477, %v478
    %v480 = vshll.u32 2475754826, %v474
    %v481 = vshrl.u32 2131351028, %v475
    %v482 = vor.u32 %v480, %v481
    %v483 = vshll.u32 2131351028, %v474
    %v484 = vshrl.u32 2102212464, %v475
    %v485 = vor.u32 %v483, %v484
    %v486 = vshll.u32 2102212464, %v474
    %v487 = vshrl.u32 920167782, %v475
    %v488 = vor.u32 %v486, %v487
    %v489 = vshll.u32 920167782, %v474
    %v490 = vshrl.u32 1326507024, %v475
    %v491 = vor.u32 %v489, %v490
    %vm492 = vcmp.lt.s32.totalorder %v473, 1
    %vm493 = vcmp.lt.s32.totalorder %v473, 2
    %vm494 = vcmp.lt.s32.totalorder %v473, 3
    %vm495 = vcmp.lt.s32.totalorder %v473, 4
    %v496 = vsel %vm492, %v476, %v479
    %v497 = vsel %vm495, %v485, 2102212464
    %v498 = vsel %vm494, %v482, %v497
    %v499 = vsel %vm493, %v496, %v498
    %v500 = vsel %vm492, %v479, %v482
    %v501 = vsel %vm495, %v488, 920167782
    %v502 = vsel %vm494, %v485, %v501
    %v503 = vsel %vm493, %v500, %v502
    %v504 = vsel %vm492, %v482, %v485
    %v505 = vsel %vm495, %v491, 1326507024
    %v506 = vsel %vm494, %v488, %v505
    %v507 = vsel %vm493, %v504, %v506
    %v508 = vshll.u32 %v468, 8
    %v509 = vmul.u32.u64.compose %v508, %v507
    %v510 = vextract.low.u32 %v509
    %v511 = vextract.high.u32 %v509
    %v512 = vmul.u32.u64.compose %v508, %v503
    %v513 = vextract.low.u32 %v512
    %v514 = vextract.high.u32 %v512
    %v515 = vmul.u32 %v508, %v499
    %v516 = vadd.s32 %v511, %v513
    %vm517 = vc.u32 %v511, %v513
    %v518 = vadd.s32 %v514, 1
    %v519 = vsel %vm517, %v518, %v514
    %v520 = vadd.s32 %v515, %v519
    %v521 = vadd.s32 %v520, 536870912
    %v522 = vshrl.u32 %v521, 30
    %v523 = vshll.u32 %v522, 30
    %v524 = vsub.s32 %v520, %v523
    %vm525 = vcmp.lt.s32.totalorder %v524, 0
    %v526 = vsub.s32 0, %v524
    %v527 = vsel %vm525, %v526, %v524
    %v528 = vclz %v527
    %v529 = vsub.s32 %v528, 2
    %vm530 = vcmp.gt.s32.totalorder 0, %v529
    %v531 = vsel %vm530, 0, %v529
    %v532 = vsub.s32 32, %v531
    %v533 = vshll.u32 %v524, %v531
    %v534 = vshrl.u32 %v516, %v532
    %v535 = vor.u32 %v533, %v534
    %v536 = vsub.s32 4294967266, %v531
    %v537 = vadd.s32 %v536, 127
    %v538 = vshll.u32 %v537, 23
    %v539 = vor.u32 4788187, %v538
    %v540 = vand.u32 2147483647, %v539
    %v542 = vcvt.s32.f32 %v535
    %v543 = vmul.f32 %v542, %v540
    %v544 = vxor.u32 %v543, 2147483648
    %v545 = vsel %vm462, %v544, %v543
    %v546 = vsub.s32 4, %v522
    %v547 = vsel %vm462, %v546, %v522
    %v548 = vsel %vm461, %v28, %v545
    %v549 = vsel %vm461, 0, %v547
    %v550 = vcosq.f32.pop %v548
    %v551 = vsinq.f32.pop %v548
    %vm552 = vweird.f32 %v28
    %v553 = vadd.s32 %v549, 3
    %v554 = vand.u32 %v553, 3
    %vm555 = vcmp.lt.s32.totalorder %v554, 2
    %vm556 = vcmp.eq.s32.totalorder %v554, 0
    %v557 = vxor.u32 %v551, 2147483648
    %v558 = vsel %vm556, %v550, %v557
    %vm559 = vcmp.eq.s32.totalorder %v554, 2
    %v560 = vxor.u32 %v550, 2147483648
    %v561 = vsel %vm559, %v560, %v551
    %v562 = vsel %vm555, %v558, %v561
    %v563 = vsel %vm552, nan, %v562
    %v564 = vand.u32 2147483647, %v29
    %vm565 = vcmp.le.f32.partialorder %v564, 0.7853982
    %vm566 = vcmp.lt.s32.totalorder %v29, 0
    %v567 = vand.u32 %v29, 2139095040
    %v568 = vshrl.u32 %v567, 23
    %v569 = vsub.s32 %v568, 127
    %v570 = vand.u32 2147483647, %v29
    %v571 = vand.u32 %v570, 8388607
    %v572 = vor.u32 %v571, 8388608
    %v573 = vsub.s32 0, %v572
    %v574 = vadd.s32 %v569, 1
    %vm575 = vcmp.gt.s32.totalorder %v574, 0
    %v576 = vsel %vm575, %v574, 0
    %v577 = vshrl.u32 %v576, 5
    %v578 = vand.u32 %v576, 31
    %v579 = vsub.s32 32, %v578
    %v580 = vshrl.u32 683565275, %v579
    %v581 = vshll.u32 683565275, %v578
    %v582 = vshrl.u32 2475754826, %v579
    %v583 = vor.u32 %v581, %v582
    %v584 = vshll.u32 2475754826, %v578
    %v585 = vshrl.u32 2131351028, %v579
    %v586 = vor.u32 %v584, %v585
    %v587 = vshll.u32 2131351028, %v578
    %v588 = vshrl.u32 2102212464, %v579
    %v589 = vor.u32 %v587, %v588
    %v590 = vshll.u32 2102212464, %v578
    %v591 = vshrl.u32 920167782, %v579
    %v592 = vor.u32 %v590, %v591
    %v593 = vshll.u32 920167782, %v578
    %v594 = vshrl.u32 1326507024, %v579
    %v595 = vor.u32 %v593, %v594
    %vm596 = vcmp.lt.s32.totalorder %v577, 1
    %vm597 = vcmp.lt.s32.totalorder %v577, 2
    %vm598 = vcmp.lt.s32.totalorder %v577, 3
    %vm599 = vcmp.lt.s32.totalorder %v577, 4
    %v600 = vsel %vm596, %v580, %v583
    %v601 = vsel %vm599, %v589, 2102212464
    %v602 = vsel %vm598, %v586, %v601
    %v603 = vsel %vm597, %v600, %v602
    %v604 = vsel %vm596, %v583, %v586
    %v605 = vsel %vm599, %v592, 920167782
    %v606 = vsel %vm598, %v589, %v605
    %v607 = vsel %vm597, %v604, %v606
    %v608 = vsel %vm596, %v586, %v589
    %v609 = vsel %vm599, %v595, 1326507024
    %v610 = vsel %vm598, %v592, %v609
    %v611 = vsel %vm597, %v608, %v610
    %v612 = vshll.u32 %v572, 8
    %v613 = vmul.u32.u64.compose %v612, %v611
    %v614 = vextract.low.u32 %v613
    %v615 = vextract.high.u32 %v613
    %v616 = vmul.u32.u64.compose %v612, %v607
    %v617 = vextract.low.u32 %v616
    %v618 = vextract.high.u32 %v616
    %v619 = vmul.u32 %v612, %v603
    %v620 = vadd.s32 %v615, %v617
    %vm621 = vc.u32 %v615, %v617
    %v622 = vadd.s32 %v618, 1
    %v623 = vsel %vm621, %v622, %v618
    %v624 = vadd.s32 %v619, %v623
    %v625 = vadd.s32 %v624, 536870912
    %v626 = vshrl.u32 %v625, 30
    %v627 = vshll.u32 %v626, 30
    %v628 = vsub.s32 %v624, %v627
    %vm629 = vcmp.lt.s32.totalorder %v628, 0
    %v630 = vsub.s32 0, %v628
    %v631 = vsel %vm629, %v630, %v628
    %v632 = vclz %v631
    %v633 = vsub.s32 %v632, 2
    %vm634 = vcmp.gt.s32.totalorder 0, %v633
    %v635 = vsel %vm634, 0, %v633
    %v636 = vsub.s32 32, %v635
    %v637 = vshll.u32 %v628, %v635
    %v638 = vshrl.u32 %v620, %v636
    %v639 = vor.u32 %v637, %v638
    %v640 = vsub.s32 4294967266, %v635
    %v641 = vadd.s32 %v640, 127
    %v642 = vshll.u32 %v641, 23
    %v643 = vor.u32 4788187, %v642
    %v644 = vand.u32 2147483647, %v643
    %v646 = vcvt.s32.f32 %v639
    %v647 = vmul.f32 %v646, %v644
    %v648 = vxor.u32 %v647, 2147483648
    %v649 = vsel %vm566, %v648, %v647
    %v650 = vsub.s32 4, %v626
    %v651 = vsel %vm566, %v650, %v626
    %v652 = vsel %vm565, %v29, %v649
    %v653 = vsel %vm565, 0, %v651
    %v654 = vcosq.f32.pop %v652
    %v655 = vsinq.f32.pop %v652
    %vm656 = vweird.f32 %v29
    %v657 = vadd.s32 %v653, 3
    %v658 = vand.u32 %v657, 3
    %vm659 = vcmp.lt.s32.totalorder %v658, 2
    %vm660 = vcmp.eq.s32.totalorder %v658, 0
    %v661 = vxor.u32 %v655, 2147483648
    %v662 = vsel %vm660, %v654, %v661
    %vm663 = vcmp.eq.s32.totalorder %v658, 2
    %v664 = vxor.u32 %v654, 2147483648
    %v665 = vsel %vm663, %v664, %v655
    %v666 = vsel %vm659, %v662, %v665
    %v667 = vsel %vm656, nan, %v666
    %v668 = vand.u32 2147483647, %v30
    %vm669 = vcmp.le.f32.partialorder %v668, 0.7853982
    %vm670 = vcmp.lt.s32.totalorder %v30, 0
    %v671 = vand.u32 %v30, 2139095040
    %v672 = vshrl.u32 %v671, 23
    %v673 = vsub.s32 %v672, 127
    %v674 = vand.u32 2147483647, %v30
    %v675 = vand.u32 %v674, 8388607
    %v676 = vor.u32 %v675, 8388608
    %v677 = vsub.s32 0, %v676
    %v678 = vadd.s32 %v673, 1
    %vm679 = vcmp.gt.s32.totalorder %v678, 0
    %v680 = vsel %vm679, %v678, 0
    %v681 = vshrl.u32 %v680, 5
    %v682 = vand.u32 %v680, 31
    %v683 = vsub.s32 32, %v682
    %v684 = vshrl.u32 683565275, %v683
    %v685 = vshll.u32 683565275, %v682
    %v686 = vshrl.u32 2475754826, %v683
    %v687 = vor.u32 %v685, %v686
    %v688 = vshll.u32 2475754826, %v682
    %v689 = vshrl.u32 2131351028, %v683
    %v690 = vor.u32 %v688, %v689
    %v691 = vshll.u32 2131351028, %v682
    %v692 = vshrl.u32 2102212464, %v683
    %v693 = vor.u32 %v691, %v692
    %v694 = vshll.u32 2102212464, %v682
    %v695 = vshrl.u32 920167782, %v683
    %v696 = vor.u32 %v694, %v695
    %v697 = vshll.u32 920167782, %v682
    %v698 = vshrl.u32 1326507024, %v683
    %v699 = vor.u32 %v697, %v698
    %vm700 = vcmp.lt.s32.totalorder %v681, 1
    %vm701 = vcmp.lt.s32.totalorder %v681, 2
    %vm702 = vcmp.lt.s32.totalorder %v681, 3
    %vm703 = vcmp.lt.s32.totalorder %v681, 4
    %v704 = vsel %vm700, %v684, %v687
    %v705 = vsel %vm703, %v693, 2102212464
    %v706 = vsel %vm702, %v690, %v705
    %v707 = vsel %vm701, %v704, %v706
    %v708 = vsel %vm700, %v687, %v690
    %v709 = vsel %vm703, %v696, 920167782
    %v710 = vsel %vm702, %v693, %v709
    %v711 = vsel %vm701, %v708, %v710
    %v712 = vsel %vm700, %v690, %v693
    %v713 = vsel %vm703, %v699, 1326507024
    %v714 = vsel %vm702, %v696, %v713
    %v715 = vsel %vm701, %v712, %v714
    %v716 = vshll.u32 %v676, 8
    %v717 = vmul.u32.u64.compose %v716, %v715
    %v718 = vextract.low.u32 %v717
    %v719 = vextract.high.u32 %v717
    %v720 = vmul.u32.u64.compose %v716, %v711
    %v721 = vextract.low.u32 %v720
    %v722 = vextract.high.u32 %v720
    %v723 = vmul.u32 %v716, %v707
    %v724 = vadd.s32 %v719, %v721
    %vm725 = vc.u32 %v719, %v721
    %v726 = vadd.s32 %v722, 1
    %v727 = vsel %vm725, %v726, %v722
    %v728 = vadd.s32 %v723, %v727
    %v729 = vadd.s32 %v728, 536870912
    %v730 = vshrl.u32 %v729, 30
    %v731 = vshll.u32 %v730, 30
    %v732 = vsub.s32 %v728, %v731
    %vm733 = vcmp.lt.s32.totalorder %v732, 0
    %v734 = vsub.s32 0, %v732
    %v735 = vsel %vm733, %v734, %v732
    %v736 = vclz %v735
    %v737 = vsub.s32 %v736, 2
    %vm738 = vcmp.gt.s32.totalorder 0, %v737
    %v739 = vsel %vm738, 0, %v737
    %v740 = vsub.s32 32, %v739
    %v741 = vshll.u32 %v732, %v739
    %v742 = vshrl.u32 %v724, %v740
    %v743 = vor.u32 %v741, %v742
    %v744 = vsub.s32 4294967266, %v739
    %v745 = vadd.s32 %v744, 127
    %v746 = vshll.u32 %v745, 23
    %v747 = vor.u32 4788187, %v746
    %v748 = vand.u32 2147483647, %v747
    %v750 = vcvt.s32.f32 %v743
    %v751 = vmul.f32 %v750, %v748
    %v752 = vxor.u32 %v751, 2147483648
    %v753 = vsel %vm670, %v752, %v751
    %v754 = vsub.s32 4, %v730
    %v755 = vsel %vm670, %v754, %v730
    %v756 = vsel %vm669, %v30, %v753
    %v757 = vsel %vm669, 0, %v755
    %v758 = vcosq.f32.pop %v756
    %v759 = vsinq.f32.pop %v756
    %vm760 = vweird.f32 %v30
    %v761 = vadd.s32 %v757, 3
    %v762 = vand.u32 %v761, 3
    %vm763 = vcmp.lt.s32.totalorder %v762, 2
    %vm764 = vcmp.eq.s32.totalorder %v762, 0
    %v765 = vxor.u32 %v759, 2147483648
    %v766 = vsel %vm764, %v758, %v765
    %vm767 = vcmp.eq.s32.totalorder %v762, 2
    %v768 = vxor.u32 %v758, 2147483648
    %v769 = vsel %vm767, %v768, %v759
    %v770 = vsel %vm763, %v766, %v769
    %v771 = vsel %vm760, nan, %v770
    %v772 = vand.u32 2147483647, %v31
    %vm773 = vcmp.le.f32.partialorder %v772, 0.7853982
    %vm774 = vcmp.lt.s32.totalorder %v31, 0
    %v775 = vand.u32 %v31, 2139095040
    %v776 = vshrl.u32 %v775, 23
    %v777 = vsub.s32 %v776, 127
    %v778 = vand.u32 2147483647, %v31
    %v779 = vand.u32 %v778, 8388607
    %v780 = vor.u32 %v779, 8388608
    %v781 = vsub.s32 0, %v780
    %v782 = vadd.s32 %v777, 1
    %vm783 = vcmp.gt.s32.totalorder %v782, 0
    %v784 = vsel %vm783, %v782, 0
    %v785 = vshrl.u32 %v784, 5
    %v786 = vand.u32 %v784, 31
    %v787 = vsub.s32 32, %v786
    %v788 = vshrl.u32 683565275, %v787
    %v789 = vshll.u32 683565275, %v786
    %v790 = vshrl.u32 2475754826, %v787
    %v791 = vor.u32 %v789, %v790
    %v792 = vshll.u32 2475754826, %v786
    %v793 = vshrl.u32 2131351028, %v787
    %v794 = vor.u32 %v792, %v793
    %v795 = vshll.u32 2131351028, %v786
    %v796 = vshrl.u32 2102212464, %v787
    %v797 = vor.u32 %v795, %v796
    %v798 = vshll.u32 2102212464, %v786
    %v799 = vshrl.u32 920167782, %v787
    %v800 = vor.u32 %v798, %v799
    %v801 = vshll.u32 920167782, %v786
    %v802 = vshrl.u32 1326507024, %v787
    %v803 = vor.u32 %v801, %v802
    %vm804 = vcmp.lt.s32.totalorder %v785, 1
    %vm805 = vcmp.lt.s32.totalorder %v785, 2
    %vm806 = vcmp.lt.s32.totalorder %v785, 3
    %vm807 = vcmp.lt.s32.totalorder %v785, 4
    %v808 = vsel %vm804, %v788, %v791
    %v809 = vsel %vm807, %v797, 2102212464
    %v810 = vsel %vm806, %v794, %v809
    %v811 = vsel %vm805, %v808, %v810
    %v812 = vsel %vm804, %v791, %v794
    %v813 = vsel %vm807, %v800, 920167782
    %v814 = vsel %vm806, %v797, %v813
    %v815 = vsel %vm805, %v812, %v814
    %v816 = vsel %vm804, %v794, %v797
    %v817 = vsel %vm807, %v803, 1326507024
    %v818 = vsel %vm806, %v800, %v817
    %v819 = vsel %vm805, %v816, %v818
    %v820 = vshll.u32 %v780, 8
    %v821 = vmul.u32.u64.compose %v820, %v819
    %v822 = vextract.low.u32 %v821
    %v823 = vextract.high.u32 %v821
    %v824 = vmul.u32.u64.compose %v820, %v815
    %v825 = vextract.low.u32 %v824
    %v826 = vextract.high.u32 %v824
    %v827 = vmul.u32 %v820, %v811
    %v828 = vadd.s32 %v823, %v825
    %vm829 = vc.u32 %v823, %v825
    %v830 = vadd.s32 %v826, 1
    %v831 = vsel %vm829, %v830, %v826
    %v832 = vadd.s32 %v827, %v831
    %v833 = vadd.s32 %v832, 536870912
    %v834 = vshrl.u32 %v833, 30
    %v835 = vshll.u32 %v834, 30
    %v836 = vsub.s32 %v832, %v835
    %vm837 = vcmp.lt.s32.totalorder %v836, 0
    %v838 = vsub.s32 0, %v836
    %v839 = vsel %vm837, %v838, %v836
    %v840 = vclz %v839
    %v841 = vsub.s32 %v840, 2
    %vm842 = vcmp.gt.s32.totalorder 0, %v841
    %v843 = vsel %vm842, 0, %v841
    %v844 = vsub.s32 32, %v843
    %v845 = vshll.u32 %v836, %v843
    %v846 = vshrl.u32 %v828, %v844
    %v847 = vor.u32 %v845, %v846
    %v848 = vsub.s32 4294967266, %v843
    %v849 = vadd.s32 %v848, 127
    %v850 = vshll.u32 %v849, 23
    %v851 = vor.u32 4788187, %v850
    %v852 = vand.u32 2147483647, %v851
    %v854 = vcvt.s32.f32 %v847
    %v855 = vmul.f32 %v854, %v852
    %v856 = vxor.u32 %v855, 2147483648
    %v857 = vsel %vm774, %v856, %v855
    %v858 = vsub.s32 4, %v834
    %v859 = vsel %vm774, %v858, %v834
    %v860 = vsel %vm773, %v31, %v857
    %v861 = vsel %vm773, 0, %v859
    %v862 = vcosq.f32.pop %v860
    %v863 = vsinq.f32.pop %v860
    %vm864 = vweird.f32 %v31
    %v865 = vadd.s32 %v861, 3
    %v866 = vand.u32 %v865, 3
    %vm867 = vcmp.lt.s32.totalorder %v866, 2
    %vm868 = vcmp.eq.s32.totalorder %v866, 0
    %v869 = vxor.u32 %v863, 2147483648
    %v870 = vsel %vm868, %v862, %v869
    %vm871 = vcmp.eq.s32.totalorder %v866, 2
    %v872 = vxor.u32 %v862, 2147483648
    %v873 = vsel %vm871, %v872, %v863
    %v874 = vsel %vm867, %v870, %v873
    %v875 = vsel %vm864, nan, %v874
    %v876 = vmul.f32 %v37, %v563
    %v877 = vmul.f32 %v39, %v667
    %v878 = vmul.f32 %v41, %v771
    %v879 = vmul.f32 %v43, %v875
    %v880 = vadd.f32 %v456, 1.0
    %v881 = vadd.f32 %v457, 1.0
    %v882 = vadd.f32 %v458, 1.0
    %v883 = vadd.f32 %v459, 1.0
    %v884 = vmul.f32 %v880, %v880
    %v885 = vmul.f32 %v881, %v881
    %v886 = vmul.f32 %v882, %v882
    %v887 = vmul.f32 %v883, %v883
    %v888 = vmul.f32 %v876, %v876
    %v889 = vmul.f32 %v877, %v877
    %v890 = vmul.f32 %v878, %v878
    %v891 = vmul.f32 %v879, %v879
    %v892 = vadd.f32 %v884, %v888
    %v893 = vadd.f32 %v885, %v889
    %v894 = vadd.f32 %v886, %v890
    %v895 = vadd.f32 %v887, %v891
    %v896 = vrcp.pop %v892
    %v897 = vrcp.pop %v893
    %v898 = vrcp.pop %v894
    %v899 = vrcp.pop %v895
    %v900 = vmul.f32 %v892, %v896
    %v901 = vmul.f32 %v893, %v897
    %v902 = vmul.f32 %v894, %v898
    %v903 = vmul.f32 %v895, %v899
    %v904 = vsub.f32 2.0, %v900
    %v905 = vsub.f32 2.0, %v901
    %v906 = vsub.f32 2.0, %v902
    %v907 = vsub.f32 2.0, %v903
    %v908 = vmul.f32 %v896, %v904
    %v909 = vmul.f32 %v897, %v905
    %v910 = vmul.f32 %v898, %v906
    %v911 = vmul.f32 %v899, %v907
    %v912 = vmul.f32 %v880, %v908
    %v913 = vmul.f32 %v881, %v909
    %v914 = vmul.f32 %v882, %v910
    %v915 = vmul.f32 %v883, %v911
    %916 = vst [vmem:[#allocation5] sm:$0xff] %v912
    %917 = vst [vmem:[#allocation5 + $0x8] sm:$0xff] %v913
    %918 = vst [vmem:[#allocation5 + $0x10] sm:$0xff] %v914
    %919 = vst [vmem:[#allocation5 + $0x18] sm:$0xff] %v915
    %v920 = vmul.f32 %v876, %v908
    %v921 = vmul.f32 %v877, %v909
    %v922 = vmul.f32 %v878, %v910
    %v923 = vmul.f32 %v879, %v911
    %s924 = scalar_lea.vmem [#allocation5], 32
    %925 = vst [vmem:[%s924] sm:$0xff] %v920
    %926 = vst [vmem:[%s924 + $0x8] sm:$0xff] %v921
    %927 = vst [vmem:[%s924 + $0x10] sm:$0xff] %v922
    %928 = vst [vmem:[%s924 + $0x18] sm:$0xff] %v923
    // Predicated region
    $region10: #{tpu_custom_call.1} parent=1 // pred_check
      _
    $region11: #{tpu_custom_call.1} parent=1 // pred_check_branch
      %930 = sbr.rel (0) target = $region13
    $region12: #{tpu_custom_call.1} parent=1 // pred_region
      %s932 = ssub.s32 1024, 1024
      %933 = vsyncadd [#allocation4], %s932
      %s934 = sshll.u32 [#allocation5], 4
      %s935 = int_to_ptr.vmem [resolvable:$true] %s934
      %940 = dma.vmem_to_hbm [thread:$0]  %s935, 1024, %s1, [#allocation4], 512, 512, 32
    $region13: #{tpu_custom_call.1} parent=1 // pred_fallthru
      _
    // Predicated region
    $region14: #{tpu_custom_call.1} parent=1 // pred_check
      _
    $region15: #{tpu_custom_call.1} parent=1 // pred_check_branch
      %942 = sbr.rel (0) target = $region17
    $region16: #{tpu_custom_call.1} parent=1 // pred_region
      %943 = dma.done [#allocation4], 1024
    $region17: #{tpu_custom_call.1} parent=1 // pred_fallthru
      _
    %944 = vsyncpa [#allocation3], 1
    %945 = vsyncpa [#allocation4], 1

</llo_original>
